<compile_context>
chip_gen: v5e
topology: v5e:2x2
jax: 0.10.0
libtpu: 0.0.40
codegen_flags: <defaults>
</compile_context>

<pallas_src>
import jax
import jax.numpy as jnp
from jax.experimental import pallas as pl
from jax.experimental.pallas import tpu as pltpu


def _round_up(n, m):
    return ((n + m - 1) // m) * m


# ------------------------------ Pallas kernel ------------------------------ #
def _regressor_kernel(x_ref, w1_ref, b1_ref, w2_ref, b2_ref, w3_ref, b3_ref,
                      o_ref):
    """Fused Regressor forward on one (D, TB) batch tile (batch on lanes)."""
    x = x_ref[...]                                              # (D, TB) f32

    # to_complex on the raw state layout; normalization is folded into w1/b1.
    z = jnp.concatenate([x, jnp.sin(x), jnp.cos(x)], axis=0)    # (3D, TB)
    z = z.astype(jnp.bfloat16)

    h1 = jnp.dot(w1_ref[...], z, preferred_element_type=jnp.float32) + b1_ref[...]
    h1 = jnp.maximum(h1, 0.0).astype(jnp.bfloat16)              # (H, TB)

    h2 = jnp.dot(w2_ref[...], h1, preferred_element_type=jnp.float32) + b2_ref[...]
    h2 = jnp.maximum(h2, 0.0).astype(jnp.bfloat16)              # (H, TB)

    y = jnp.dot(w3_ref[...], h2, preferred_element_type=jnp.float32) + b3_ref[...]
    o_ref[...] = y.astype(o_ref.dtype)                          # (U, TB)


# --------------------------------- Wrapper --------------------------------- #
class PallasRegressor:
    """JAX/Pallas equivalent of prob_mbrl.models.core.Regressor
    (2-hidden-layer ReLU MLP model, output_density=None)."""

    def __init__(self, params, mx, Sx, angle_dims=(), tile_b=1024):
        w1, b1, w2, b2, w3, b3 = [jnp.asarray(p, jnp.float32) for p in params]
        self.angle_dims = tuple(int(a) for a in angle_dims)
        d_complex, H = w1.shape
        n_a = len(self.angle_dims)
        d_state = d_complex - n_a
        other = tuple(i for i in range(d_state) if i not in self.angle_dims)
        n_o = len(other)
        assert n_o + 2 * n_a == d_complex, "inconsistent angle_dims / w1"
        U = w3.shape[1]

        def scatter_rows(rows, idx):
            out = jnp.zeros((d_state, H), jnp.float32)
            if len(idx):
                out = out.at[jnp.asarray(idx, jnp.int32), :].set(rows)
            return out

        def scatter_vec(vals, idx, fill):
            out = jnp.full((d_state,), float(fill), jnp.float32)
            if len(idx):
                out = out.at[jnp.asarray(idx, jnp.int32)].set(vals)
            return out

        mx = jnp.asarray(mx, jnp.float32).reshape(d_complex)
        Sx = jnp.asarray(Sx, jnp.float32).reshape(d_complex)
        iSx = 1.0 / Sx

        # Remap first-layer weights / stats onto the raw (un-gathered) state
        # layout so to_complex is fully fused into the kernel: rows for
        # [raw x | sin(x) | cos(x)], zero rows at non-selected positions.
        Wo = scatter_rows(w1[:n_o], other)
        Ws = scatter_rows(w1[n_o:n_o + n_a], self.angle_dims)
        Wc = scatter_rows(w1[n_o + n_a:], self.angle_dims)
        W_raw = jnp.concatenate([Wo, Ws, Wc], axis=0)            # (3*d_state, H)

        m_full = jnp.concatenate([
            scatter_vec(mx[:n_o], other, 0.0),
            scatter_vec(mx[n_o:n_o + n_a], self.angle_dims, 0.0),
            scatter_vec(mx[n_o + n_a:], self.angle_dims, 0.0)], axis=0)
        is_full = jnp.concatenate([
            scatter_vec(iSx[:n_o], other, 1.0),
            scatter_vec(iSx[n_o:n_o + n_a], self.angle_dims, 1.0),
            scatter_vec(iSx[n_o + n_a:], self.angle_dims, 1.0)], axis=0)

        b1_vec = b1.reshape(-1)
        # Fold normalization: (z - m)*iSx @ W + b == z @ (diag(iSx)W) + (b - (m*iSx)@W)
        W_norm = W_raw * is_full[:, None]
        b1_norm = b1_vec - (m_full * is_full) @ W_raw

        # Transposed (feature-major) weights, bf16 MXU operands.
        self.w1t_norm = W_norm.T.astype(jnp.bfloat16)            # (H, 3*d_state)
        self.b1_norm = b1_norm.reshape(H, 1)
        self.w1t_raw = W_raw.T.astype(jnp.bfloat16)
        self.b1_raw = b1_vec.reshape(H, 1)
        self.w2t = w2.T.astype(jnp.bfloat16)                     # (H, H)
        self.b2 = b2.reshape(-1).reshape(H, 1)
        self.w3t = w3.T.astype(jnp.bfloat16)                     # (U, H)
        self.b3 = b3.reshape(-1).reshape(U, 1)

        self.d_state = d_state
        self.hidden = H
        self.u_out = U
        # lane-aligned tile; 1024 keeps well within v5e's 16 MiB scoped VMEM
        self.tile_b = max(128, (int(tile_b) // 128) * 128)

        self._jit_forward = jax.jit(self._forward_impl,
                                    static_argnames=("normalize",))

    def __call__(self, x, normalize=True):
        return self._jit_forward(jnp.asarray(x, jnp.float32),
                                 normalize=normalize)

    def _choose_tile(self, B):
        if B <= 256:
            return B                                 # one full-extent tile
        # >=2 grid steps when B is large (v7x megacore), lane-aligned.
        half = _round_up(pl.cdiv(B, 2), 128)
        return max(128, (min(self.tile_b, half) // 128) * 128)

    def _forward_impl(self, x, normalize=True):
        if x.ndim == 1:
            x = x[None, :]
        B, D = x.shape
        assert D == self.d_state, (D, self.d_state)
        H, U = self.hidden, self.u_out

        x_t = x.T                                    # (D, B): batch on lanes
        w1t, b1c = ((self.w1t_norm, self.b1_norm) if normalize
                    else (self.w1t_raw, self.b1_raw))

        TB = self._choose_tile(B)
        grid = (pl.cdiv(B, TB),)

        resident = (w1t, b1c, self.w2t, self.b2, self.w3t, self.b3)
        in_specs = [pl.BlockSpec((D, TB), lambda i: (0, i))]
        in_specs += [pl.BlockSpec(a.shape, lambda i: (0, 0)) for a in resident]

        flops = 2 * B * (3 * D * H + H * H + H * U)
        bytes_accessed = (4 * B * (D + U)
                          + 2 * (w1t.size + self.w2t.size + self.w3t.size)
                          + 4 * (H + H + U))

        out = pl.pallas_call(
            _regressor_kernel,
            out_shape=jax.ShapeDtypeStruct((U, B), jnp.float32),
            grid=grid,
            in_specs=in_specs,
            out_specs=pl.BlockSpec((U, TB), lambda i: (0, i)),
            compiler_params=pltpu.CompilerParams(
                dimension_semantics=("parallel",)),
            cost_estimate=pl.CostEstimate(
                flops=int(flops),
                transcendentals=int(2 * B * D),
                bytes_accessed=int(bytes_accessed)),
        )(x_t, *resident)
        return out.T                                 # (B, U)


# ------------------------------ JAX references ------------------------------ #
def to_complex(x, angle_dims):
    """prob_mbrl.to_complex: replace angle dims by (sin, cos) embedding."""
    if len(angle_dims) == 0:
        return x
    d = x.shape[-1]
    angle = [int(a) for a in angle_dims]
    other = [i for i in range(d) if i not in angle]
    xa = x[..., jnp.asarray(angle, jnp.int32)]
    parts = []
    if other:
        parts.append(x[..., jnp.asarray(other, jnp.int32)])
    parts.extend([jnp.sin(xa), jnp.cos(xa)])
    return jnp.concatenate(parts, axis=-1)


def reference_forward_f32(params, mx, Sx, angle_dims, x, normalize=True):
    """Exact Regressor.forward math (f32, original weight layout)."""
    x = jnp.asarray(x, jnp.float32)
    if x.ndim == 1:
        x = x[None, :]
    xc = to_complex(x, angle_dims)
    if normalize:
        xc = (xc - mx) * (1.0 / Sx)
    w1, b1, w2, b2, w3, b3 = params
    h1 = jnp.maximum(xc @ w1 + b1, 0.0)
    h2 = jnp.maximum(h1 @ w2 + b2, 0.0)
    return h2 @ w3 + b3


def reference_forward_kernel_math(reg, x, normalize=True):
    """Same folded / transposed / bf16 math the Pallas kernel performs."""
    x = jnp.asarray(x, jnp.float32)
    if x.ndim == 1:
        x = x[None, :]
    xt = x.T
    z = jnp.concatenate([xt, jnp.sin(xt), jnp.cos(xt)], axis=0).astype(jnp.bfloat16)
    w1t, b1c = (reg.w1t_norm, reg.b1_norm) if normalize else (reg.w1t_raw, reg.b1_raw)
    h1 = jnp.maximum(
        jnp.dot(w1t, z, preferred_element_type=jnp.float32) + b1c, 0.0
    ).astype(jnp.bfloat16)
    h2 = jnp.maximum(
        jnp.dot(reg.w2t, h1, preferred_element_type=jnp.float32) + reg.b2, 0.0
    ).astype(jnp.bfloat16)
    y = jnp.dot(reg.w3t, h2, preferred_element_type=jnp.float32) + reg.b3
    return y.T


# ---------------------------- deterministic setup ---------------------------- #
def init_mlp_params(key, d_in, hidden, d_out):
    k1, k2, k3 = jax.random.split(key, 3)

    def lin(k, fan_in, fan_out):
        w = jax.random.normal(k, (fan_in, fan_out), dtype=jnp.float32)
        return w / jnp.sqrt(jnp.float32(fan_in))

    w1 = lin(k1, d_in, hidden)
    b1 = jnp.zeros((1, hidden), dtype=jnp.float32)
    w2 = lin(k2, hidden, hidden)
    b2 = jnp.zeros((1, hidden), dtype=jnp.float32)
    w3 = lin(k3, hidden, d_out)
    b3 = jnp.zeros((1, d_out), dtype=jnp.float32)
    return (w1, b1, w2, b2, w3, b3)


if __name__ == "__main__":
    key = jax.random.PRNGKey(0)
    k_params, k_x, k_data, k_big = jax.random.split(key, 4)

    # state dim 4, angle dims (2, 3) -> complex state dim 2 + 2*2 = 6
    STATE_DIM, ANGLE_DIMS = 4, (2, 3)
    HIDDEN, OUT_DIM = 32, 2
    D_COMPLEX = STATE_DIM - len(ANGLE_DIMS) + 2 * len(ANGLE_DIMS)   # 6

    params = init_mlp_params(k_params, D_COMPLEX, HIDDEN, OUT_DIM)

    # Regressor.set_dataset(): normalization stats over to_complex(X)
    X_data = jax.random.normal(k_data, (64, STATE_DIM), dtype=jnp.float32)
    Xc = to_complex(X_data, ANGLE_DIMS)
    mx = Xc.mean(0, keepdims=True)
    Sx = Xc.std(0, keepdims=True)
    Sx = jnp.where(Sx == 0, 1.0, Sx)

    reg = PallasRegressor(params, mx, Sx, angle_dims=ANGLE_DIMS, tile_b=1024)

    # small batch (spec-sized) check
    x = jax.random.normal(k_x, (2, STATE_DIM), dtype=jnp.float32)
    y = reg(x)
    jax.block_until_ready(y)
    assert y.shape == (2, OUT_DIM), y.shape

    y_tight = reference_forward_kernel_math(reg, x)                  # same folded bf16 math
    y_true = reference_forward_f32(params, mx, Sx, ANGLE_DIMS, x)    # original f32 math
    assert jnp.allclose(y, y_tight, atol=5e-3, rtol=5e-3), "kernel-math mismatch"
    assert jnp.allclose(y, y_true, atol=5e-2, rtol=5e-2), "semantic mismatch vs f32 ref"

    # normalize=False path
    y_nf = reg(x, normalize=False)
    jax.block_until_ready(y_nf)
    y_nf_true = reference_forward_f32(params, mx, Sx, ANGLE_DIMS, x, normalize=False)
    assert jnp.allclose(y_nf, y_nf_true, atol=5e-2, rtol=5e-2), "normalize=False mismatch"

    # larger batch: exercises multi-step grid (2 tiles), pipelining and a partial tile
    x_big = jax.random.normal(k_big, (500, STATE_DIM), dtype=jnp.float32)
    y_big = reg(x_big)
    jax.block_until_ready(y_big)
    y_big_ref = reference_forward_kernel_math(reg, x_big)
    assert y_big.shape == (500, OUT_DIM), y_big.shape
    assert jnp.allclose(y_big, y_big_ref, atol=5e-3, rtol=5e-3), "big-batch mismatch"

    print("KERNEL_OK")
</pallas_src>

<mosaic_0001>
module attributes {stable_mosaic.version = 11 : i64} {
  func.func @_regressor_kernel(%arg0: i32, %arg1: memref<4x2xf32, #tpu.memory_space<vmem>>, %arg2: memref<32x12xbf16, #tpu.memory_space<vmem>>, %arg3: memref<32x1xf32, #tpu.memory_space<vmem>>, %arg4: memref<32x32xbf16, #tpu.memory_space<vmem>>, %arg5: memref<32x1xf32, #tpu.memory_space<vmem>>, %arg6: memref<2x32xbf16, #tpu.memory_space<vmem>>, %arg7: memref<2x1xf32, #tpu.memory_space<vmem>>, %arg8: memref<2x2xf32, #tpu.memory_space<vmem>>) attributes {dimension_semantics = [#tpu.dimension_semantics<parallel>], iteration_bounds = array<i64: 1>, scalar_prefetch = 0 : i64, scratch_operands = 0 : i64, tpu.core_type = #tpu.core_type<tc>, window_params = [{transform_indices = @transform_0, window_bounds = array<i64: 4, 2>}, {pipeline_mode = #tpu.pipeline_mode<synchronous>, transform_indices = @transform_1, window_bounds = array<i64: 32, 12>}, {pipeline_mode = #tpu.pipeline_mode<synchronous>, transform_indices = @transform_2, window_bounds = array<i64: 32, 1>}, {pipeline_mode = #tpu.pipeline_mode<synchronous>, transform_indices = @transform_3, window_bounds = array<i64: 32, 32>}, {pipeline_mode = #tpu.pipeline_mode<synchronous>, transform_indices = @transform_4, window_bounds = array<i64: 32, 1>}, {pipeline_mode = #tpu.pipeline_mode<synchronous>, transform_indices = @transform_5, window_bounds = array<i64: 2, 32>}, {pipeline_mode = #tpu.pipeline_mode<synchronous>, transform_indices = @transform_6, window_bounds = array<i64: 2, 1>}, {transform_indices = @transform_7, window_bounds = array<i64: 2, 2>}]} {
    %c0 = arith.constant 0 : index
    %c0_0 = arith.constant 0 : index
    %0 = vector.load %arg1[%c0, %c0_0] : memref<4x2xf32, #tpu.memory_space<vmem>>, vector<4x2xf32>
    %1 = math.sin %0 : vector<4x2xf32>
    %2 = math.cos %0 : vector<4x2xf32>
    %3 = tpu.concatenate %0, %1, %2 in 0 : vector<4x2xf32>, vector<4x2xf32>, vector<4x2xf32> -> vector<12x2xf32>
    %4 = arith.truncf %3 : vector<12x2xf32> to vector<12x2xbf16>
    %c0_1 = arith.constant 0 : index
    %c0_2 = arith.constant 0 : index
    %5 = vector.load %arg2[%c0_1, %c0_2] : memref<32x12xbf16, #tpu.memory_space<vmem>>, vector<32x12xbf16>
    %cst = arith.constant dense<0.000000e+00> : vector<32x2xf32>
    %6 = tpu.matmul %5, %4, %cst {dimension_numbers = #tpu.dot_dimension_numbers<[1], [0], [0], [1], [0, 0, 1, 1], [], []>} : vector<32x12xbf16>, vector<12x2xbf16>, vector<32x2xf32> -> vector<32x2xf32>
    %c0_3 = arith.constant 0 : index
    %c0_4 = arith.constant 0 : index
    %7 = vector.load %arg3[%c0_3, %c0_4] : memref<32x1xf32, #tpu.memory_space<vmem>>, vector<32x1xf32>
    %8 = vector.broadcast %7 : vector<32x1xf32> to vector<32x2xf32>
    %9 = arith.addf %6, %8 : vector<32x2xf32>
    %cst_5 = arith.constant 0.000000e+00 : f32
    %10 = vector.broadcast %cst_5 : f32 to vector<32x2xf32>
    %11 = arith.maximumf %9, %10 : vector<32x2xf32>
    %12 = arith.truncf %11 : vector<32x2xf32> to vector<32x2xbf16>
    %c0_6 = arith.constant 0 : index
    %c0_7 = arith.constant 0 : index
    %13 = vector.load %arg4[%c0_6, %c0_7] : memref<32x32xbf16, #tpu.memory_space<vmem>>, vector<32x32xbf16>
    %cst_8 = arith.constant dense<0.000000e+00> : vector<32x2xf32>
    %14 = tpu.matmul %13, %12, %cst_8 {dimension_numbers = #tpu.dot_dimension_numbers<[1], [0], [0], [1], [0, 0, 1, 1], [], []>} : vector<32x32xbf16>, vector<32x2xbf16>, vector<32x2xf32> -> vector<32x2xf32>
    %c0_9 = arith.constant 0 : index
    %c0_10 = arith.constant 0 : index
    %15 = vector.load %arg5[%c0_9, %c0_10] : memref<32x1xf32, #tpu.memory_space<vmem>>, vector<32x1xf32>
    %16 = vector.broadcast %15 : vector<32x1xf32> to vector<32x2xf32>
    %17 = arith.addf %14, %16 : vector<32x2xf32>
    %cst_11 = arith.constant 0.000000e+00 : f32
    %18 = vector.broadcast %cst_11 : f32 to vector<32x2xf32>
    %19 = arith.maximumf %17, %18 : vector<32x2xf32>
    %20 = arith.truncf %19 : vector<32x2xf32> to vector<32x2xbf16>
    %c0_12 = arith.constant 0 : index
    %c0_13 = arith.constant 0 : index
    %21 = vector.load %arg6[%c0_12, %c0_13] : memref<2x32xbf16, #tpu.memory_space<vmem>>, vector<2x32xbf16>
    %cst_14 = arith.constant dense<0.000000e+00> : vector<2x2xf32>
    %22 = tpu.matmul %21, %20, %cst_14 {dimension_numbers = #tpu.dot_dimension_numbers<[1], [0], [0], [1], [0, 0, 1, 1], [], []>} : vector<2x32xbf16>, vector<32x2xbf16>, vector<2x2xf32> -> vector<2x2xf32>
    %c0_15 = arith.constant 0 : index
    %c0_16 = arith.constant 0 : index
    %23 = vector.load %arg7[%c0_15, %c0_16] : memref<2x1xf32, #tpu.memory_space<vmem>>, vector<2x1xf32>
    %24 = vector.broadcast %23 : vector<2x1xf32> to vector<2x2xf32>
    %25 = arith.addf %22, %24 : vector<2x2xf32>
    %c0_17 = arith.constant 0 : index
    %c0_18 = arith.constant 0 : index
    %26 = vector.load %arg8[%c0_17, %c0_18] : memref<2x2xf32, #tpu.memory_space<vmem>>, vector<2x2xf32>
    tpu.vector_store %arg8[%c0_17, %c0_18], %25 {strides = array<i32>} : memref<2x2xf32, #tpu.memory_space<vmem>>, vector<2x2xf32>,
    return
  }
  func.func @transform_0(%arg0: i32) -> (i32, i32) {
    %c0_i32 = arith.constant 0 : i32
    %c0_i32_0 = arith.constant 0 : i32
    return %c0_i32, %arg0 : i32, i32
  }
  func.func @transform_1(%arg0: i32) -> (i32, i32) {
    %c0_i32 = arith.constant 0 : i32
    %c0_i32_0 = arith.constant 0 : i32
    %c0_i32_1 = arith.constant 0 : i32
    return %c0_i32, %c0_i32_0 : i32, i32
  }
  func.func @transform_2(%arg0: i32) -> (i32, i32) {
    %c0_i32 = arith.constant 0 : i32
    %c0_i32_0 = arith.constant 0 : i32
    %c0_i32_1 = arith.constant 0 : i32
    return %c0_i32, %c0_i32_0 : i32, i32
  }
  func.func @transform_3(%arg0: i32) -> (i32, i32) {
    %c0_i32 = arith.constant 0 : i32
    %c0_i32_0 = arith.constant 0 : i32
    %c0_i32_1 = arith.constant 0 : i32
    return %c0_i32, %c0_i32_0 : i32, i32
  }
  func.func @transform_4(%arg0: i32) -> (i32, i32) {
    %c0_i32 = arith.constant 0 : i32
    %c0_i32_0 = arith.constant 0 : i32
    %c0_i32_1 = arith.constant 0 : i32
    return %c0_i32, %c0_i32_0 : i32, i32
  }
  func.func @transform_5(%arg0: i32) -> (i32, i32) {
    %c0_i32 = arith.constant 0 : i32
    %c0_i32_0 = arith.constant 0 : i32
    %c0_i32_1 = arith.constant 0 : i32
    return %c0_i32, %c0_i32_0 : i32, i32
  }
  func.func @transform_6(%arg0: i32) -> (i32, i32) {
    %c0_i32 = arith.constant 0 : i32
    %c0_i32_0 = arith.constant 0 : i32
    %c0_i32_1 = arith.constant 0 : i32
    return %c0_i32, %c0_i32_0 : i32, i32
  }
  func.func @transform_7(%arg0: i32) -> (i32, i32) {
    %c0_i32 = arith.constant 0 : i32
    %c0_i32_0 = arith.constant 0 : i32
    return %c0_i32, %arg0 : i32, i32
  }
}

</mosaic_0001>

<llo_original>
// kernel: _forward_impl.1
$region0: #{_forward_impl.1}
  #allocation0 [shape = 'u32[]', space=smem, size = 0x4, offset = 0x4, fixed_abs, tag = 'smem constant byte address 0x4 - core index']
  #allocation1 [shape = 'u32[72,128]{1,0:T(1,128)}', space=vmem, size = 0x9000, scoped, tag = 'internal scratch']
  %s0 = inlined_call_operand.vmem [shape: f32[4,2], index: 0, kind: input, shape index: {}]
  %s1 = inlined_call_operand.hbm [shape: bf16[32,12], index: 1, kind: input, shape index: {}]
  %s2 = inlined_call_operand.vmem [shape: f32[32,1], index: 2, kind: input, shape index: {}]
  %s3 = inlined_call_operand.hbm [shape: bf16[32,32], index: 3, kind: input, shape index: {}]
  %s4 = inlined_call_operand.vmem [shape: f32[32,1], index: 4, kind: input, shape index: {}]
  %s5 = inlined_call_operand.vmem [shape: bf16[2,32], index: 5, kind: input, shape index: {}]
  %s6 = inlined_call_operand.vmem [shape: f32[2,1], index: 6, kind: input, shape index: {}]
  %s7 = inlined_call_operand.vmem [shape: f32[2,2], index: 7, kind: output, shape index: {}]
  %s8 = sld [smem:[#allocation0]]
  $region46: #{_forward_impl.1} parent=0
    _
  %s10 = ssub.s32 1, %s8
  %s11 = scalar_select 0, %s10, %s8
  $region1: #{_forward_impl.1} parent=0
    #allocation2 [shape = 'u8[8192]{0}', space=vmem, size = 0x2000, scoped, tag = 'input window, operand 1, single buffered']
    #allocation3 [shape = 's32[1]{0}', space=sflag, size = 0x4, scoped, tag = 'scoped memory for _forward_impl.1']
    #allocation4 [shape = 'u8[8192]{0}', space=vmem, size = 0x2000, scoped, tag = 'input window, operand 3, single buffered']
    #allocation5 [shape = 's32[1]{0}', space=sflag, size = 0x4, scoped, tag = 'scoped memory for _forward_impl.1']
    %12 = vsyncpa [#allocation3], 0
    %13 = vsyncpa [#allocation5], 0
    // Predicated region
    $region2: #{_forward_impl.1} parent=1 // pred_check
      _
    $region3: #{_forward_impl.1} parent=1 // pred_check_branch
      %15 = sbr.rel (0) target = $region5
    $region4: #{_forward_impl.1} parent=1 // pred_region
      _
    $region5: #{_forward_impl.1} parent=1 // pred_fallthru
      _
    // Predicated region
    $region6: #{_forward_impl.1} parent=1 // pred_check
      _
    $region7: #{_forward_impl.1} parent=1 // pred_check_branch
      %17 = sbr.rel (0) target = $region9
    $region8: #{_forward_impl.1} parent=1 // pred_region
      %19 = vsyncadd [#allocation3], 0
      %s20 = sshll.u32 %s1, 4
      %s21 = int_to_ptr.hbm [resolvable:$true] %s20
      %s22 = sshll.u32 [#allocation2], 4
      %s23 = int_to_ptr.vmem [resolvable:$true] %s22
      %28 = dma.hbm_to_vmem [thread:$0]  %s21, 256, %s23, [#allocation3], 64, 64, 4
    $region9: #{_forward_impl.1} parent=1 // pred_fallthru
      _
    // Predicated region
    $region10: #{_forward_impl.1} parent=1 // pred_check
      _
    $region11: #{_forward_impl.1} parent=1 // pred_check_branch
      %30 = sbr.rel (0) target = $region13
    $region12: #{_forward_impl.1} parent=1 // pred_region
      _
    $region13: #{_forward_impl.1} parent=1 // pred_fallthru
      _
    // Predicated region
    $region14: #{_forward_impl.1} parent=1 // pred_check
      _
    $region15: #{_forward_impl.1} parent=1 // pred_check_branch
      %32 = sbr.rel (0) target = $region17
    $region16: #{_forward_impl.1} parent=1 // pred_region
      %34 = vsyncadd [#allocation5], 0
      %s35 = sshll.u32 %s3, 4
      %s36 = int_to_ptr.hbm [resolvable:$true] %s35
      %s37 = sshll.u32 [#allocation4], 4
      %s38 = int_to_ptr.vmem [resolvable:$true] %s37
      %43 = dma.hbm_to_vmem [thread:$0]  %s36, 256, %s38, [#allocation5], 64, 64, 4
    $region17: #{_forward_impl.1} parent=1 // pred_fallthru
      _
    // Predicated region
    $region18: #{_forward_impl.1} parent=1 // pred_check
      _
    $region19: #{_forward_impl.1} parent=1 // pred_check_branch
      %45 = sbr.rel (0) target = $region21
    $region20: #{_forward_impl.1} parent=1 // pred_region
      _
    $region21: #{_forward_impl.1} parent=1 // pred_fallthru
      _
    // Predicated region
    $region22: #{_forward_impl.1} parent=1 // pred_check
      _
    $region23: #{_forward_impl.1} parent=1 // pred_check_branch
      %47 = sbr.rel (0) target = $region25
    $region24: #{_forward_impl.1} parent=1 // pred_region
      _
    $region25: #{_forward_impl.1} parent=1 // pred_fallthru
      _
    // Predicated region
    $region26: #{_forward_impl.1} parent=1 // pred_check
      _
    $region27: #{_forward_impl.1} parent=1 // pred_check_branch
      %49 = sbr.rel (0) target = $region29
    $region28: #{_forward_impl.1} parent=1 // pred_region
      _
    $region29: #{_forward_impl.1} parent=1 // pred_fallthru
      _
    // Predicated region
    $region30: #{_forward_impl.1} parent=1 // pred_check
      _
    $region31: #{_forward_impl.1} parent=1 // pred_check_branch
      %51 = sbr.rel (0) target = $region33
    $region32: #{_forward_impl.1} parent=1 // pred_region
      %53 = dma.done [#allocation3], 256
    $region33: #{_forward_impl.1} parent=1 // pred_fallthru
      _
    // Predicated region
    $region34: #{_forward_impl.1} parent=1 // pred_check
      _
    $region35: #{_forward_impl.1} parent=1 // pred_check_branch
      %55 = sbr.rel (0) target = $region37
    $region36: #{_forward_impl.1} parent=1 // pred_region
      %57 = dma.done [#allocation5], 256
    $region37: #{_forward_impl.1} parent=1 // pred_fallthru
      _
    %v59 = vld [vmem:[%s0] sm:$0xf]
    %v60 = vand.u32 2147483647, %v59
    %vm61 = vcmp.le.f32.partialorder %v60, 0.7853982
    %vm62 = vcmp.lt.s32.totalorder %v59, 0
    %v63 = vand.u32 %v59, 2139095040
    %v64 = vshrl.u32 %v63, 23
    %v65 = vsub.s32 %v64, 127
    %v66 = vand.u32 2147483647, %v59
    %v67 = vand.u32 %v66, 8388607
    %v68 = vor.u32 %v67, 8388608
    %v69 = vsub.s32 0, %v68
    %v70 = vadd.s32 %v65, 1
    %vm71 = vcmp.gt.s32.totalorder %v70, 0
    %v72 = vsel %vm71, %v70, 0
    %v73 = vshrl.u32 %v72, 5
    %v74 = vand.u32 %v72, 31
    %v75 = vsub.s32 32, %v74
    %v76 = vshrl.u32 683565275, %v75
    %v77 = vshll.u32 683565275, %v74
    %v78 = vshrl.u32 2475754826, %v75
    %v79 = vor.u32 %v77, %v78
    %v80 = vshll.u32 2475754826, %v74
    %v81 = vshrl.u32 2131351028, %v75
    %v82 = vor.u32 %v80, %v81
    %v83 = vshll.u32 2131351028, %v74
    %v84 = vshrl.u32 2102212464, %v75
    %v85 = vor.u32 %v83, %v84
    %v86 = vshll.u32 2102212464, %v74
    %v87 = vshrl.u32 920167782, %v75
    %v88 = vor.u32 %v86, %v87
    %v89 = vshll.u32 920167782, %v74
    %v90 = vshrl.u32 1326507024, %v75
    %v91 = vor.u32 %v89, %v90
    %vm92 = vcmp.lt.s32.totalorder %v73, 1
    %vm93 = vcmp.lt.s32.totalorder %v73, 2
    %vm94 = vcmp.lt.s32.totalorder %v73, 3
    %vm95 = vcmp.lt.s32.totalorder %v73, 4
    %v96 = vsel %vm92, %v76, %v79
    %v97 = vsel %vm95, %v85, 2102212464
    %v98 = vsel %vm94, %v82, %v97
    %v99 = vsel %vm93, %v96, %v98
    %v100 = vsel %vm92, %v79, %v82
    %v101 = vsel %vm95, %v88, 920167782
    %v102 = vsel %vm94, %v85, %v101
    %v103 = vsel %vm93, %v100, %v102
    %v104 = vsel %vm92, %v82, %v85
    %v105 = vsel %vm95, %v91, 1326507024
    %v106 = vsel %vm94, %v88, %v105
    %v107 = vsel %vm93, %v104, %v106
    %v108 = vshll.u32 %v68, 8
    %v109 = vand.u32 %v108, 65535
    %v110 = vshrl.u32 %v108, 16
    %v111 = vand.u32 %v107, 65535
    %v112 = vshrl.u32 %v107, 16
    %v113 = vmul.u32 %v109, %v111
    %v114 = vmul.u32 %v109, %v112
    %v115 = vmul.u32 %v110, %v111
    %v116 = vmul.u32 %v110, %v112
    %v117 = vshll.u32 %v114, 16
    %v118 = vshrl.u32 %v114, 16
    %v119 = vshll.u32 %v115, 16
    %v120 = vshrl.u32 %v115, 16
    %vm121 = vc.u32 %v113, %v117
    %v122 = vsel %vm121, 1, 0
    %v123 = vadd.s32 %v113, %v117
    %v124 = vadd.s32 %v116, %v122
    %vm125 = vc.u32 %v123, %v119
    %v126 = vsel %vm125, 1, 0
    %v127 = vadd.s32 %v123, %v119
    %v128 = vadd.s32 %v124, %v126
    %v129 = vadd.s32 %v128, %v118
    %v130 = vadd.s32 %v129, %v120
    %v131 = vand.u32 %v108, 65535
    %v132 = vshrl.u32 %v108, 16
    %v133 = vand.u32 %v103, 65535
    %v134 = vshrl.u32 %v103, 16
    %v135 = vmul.u32 %v131, %v133
    %v136 = vmul.u32 %v131, %v134
    %v137 = vmul.u32 %v132, %v133
    %v138 = vmul.u32 %v132, %v134
    %v139 = vshll.u32 %v136, 16
    %v140 = vshrl.u32 %v136, 16
    %v141 = vshll.u32 %v137, 16
    %v142 = vshrl.u32 %v137, 16
    %vm143 = vc.u32 %v135, %v139
    %v144 = vsel %vm143, 1, 0
    %v145 = vadd.s32 %v135, %v139
    %v146 = vadd.s32 %v138, %v144
    %vm147 = vc.u32 %v145, %v141
    %v148 = vsel %vm147, 1, 0
    %v149 = vadd.s32 %v145, %v141
    %v150 = vadd.s32 %v146, %v148
    %v151 = vadd.s32 %v150, %v140
    %v152 = vadd.s32 %v151, %v142
    %v153 = vmul.u32 %v108, %v99
    %v154 = vadd.s32 %v130, %v149
    %vm155 = vc.u32 %v130, %v149
    %v156 = vadd.s32 %v152, 1
    %v157 = vsel %vm155, %v156, %v152
    %v158 = vadd.s32 %v153, %v157
    %v159 = vadd.s32 %v158, 536870912
    %v160 = vshrl.u32 %v159, 30
    %v161 = vshll.u32 %v160, 30
    %v162 = vsub.s32 %v158, %v161
    %vm163 = vcmp.lt.s32.totalorder %v162, 0
    %v164 = vsub.s32 0, %v162
    %v165 = vsel %vm163, %v164, %v162
    %v166 = vclz %v165
    %v167 = vsub.s32 %v166, 2
    %vm168 = vcmp.gt.s32.totalorder 0, %v167
    %v169 = vsel %vm168, 0, %v167
    %v170 = vsub.s32 32, %v169
    %v171 = vshll.u32 %v162, %v169
    %v172 = vshrl.u32 %v154, %v170
    %v173 = vor.u32 %v171, %v172
    %v174 = vsub.s32 4294967266, %v169
    %v175 = vadd.s32 %v174, 127
    %v176 = vshll.u32 %v175, 23
    %v177 = vor.u32 4788187, %v176
    %v178 = vand.u32 2147483647, %v177
    %v180 = vcvt.s32.f32 %v173
    %v181 = vmul.f32 %v180, %v178
    %v182 = vxor.u32 %v181, 2147483648
    %v183 = vsel %vm62, %v182, %v181
    %v184 = vsub.s32 4, %v160
    %v185 = vsel %vm62, %v184, %v160
    %v186 = vsel %vm61, %v59, %v183
    %v187 = vsel %vm61, 0, %v185
    %v188 = vmul.f32 %v186, %v186
    %v189 = vmul.f32 %v188, -0.001358992
    %v190 = vadd.f32 %v189, 0.041655596
    %v191 = vmul.f32 %v188, %v190
    %v192 = vadd.f32 %v191, -0.4999988
    %v193 = vmul.f32 %v188, %v192
    %v194 = vadd.f32 1.0, %v193
    %v195 = vmul.f32 %v186, %v186
    %v196 = vmul.f32 %v195, -0.00019511016
    %v197 = vadd.f32 %v196, 0.008332121
    %v198 = vmul.f32 %v195, %v197
    %v199 = vadd.f32 %v198, -0.16666654
    %v200 = vmul.f32 %v195, %v199
    %v201 = vadd.f32 %v200, 1.0
    %v202 = vmul.f32 %v201, %v186
    %vm203 = vweird.f32 %v59
    %v204 = vadd.s32 %v187, 3
    %v205 = vand.u32 %v204, 3
    %vm206 = vcmp.lt.s32.totalorder %v205, 2
    %vm207 = vcmp.eq.s32.totalorder %v205, 0
    %v208 = vxor.u32 %v202, 2147483648
    %v209 = vsel %vm207, %v194, %v208
    %vm210 = vcmp.eq.s32.totalorder %v205, 2
    %v211 = vxor.u32 %v194, 2147483648
    %v212 = vsel %vm210, %v211, %v202
    %v213 = vsel %vm206, %v209, %v212
    %v214 = vsel %vm203, nan, %v213
    %v215 = vand.u32 2147483647, %v59
    %vm216 = vcmp.le.f32.partialorder %v215, 0.7853982
    %vm217 = vcmp.lt.s32.totalorder %v59, 0
    %v218 = vand.u32 %v59, 2139095040
    %v219 = vshrl.u32 %v218, 23
    %v220 = vsub.s32 %v219, 127
    %v221 = vand.u32 2147483647, %v59
    %v222 = vand.u32 %v221, 8388607
    %v223 = vor.u32 %v222, 8388608
    %v224 = vsub.s32 0, %v223
    %v225 = vadd.s32 %v220, 1
    %vm226 = vcmp.gt.s32.totalorder %v225, 0
    %v227 = vsel %vm226, %v225, 0
    %v228 = vshrl.u32 %v227, 5
    %v229 = vand.u32 %v227, 31
    %v230 = vsub.s32 32, %v229
    %v231 = vshrl.u32 683565275, %v230
    %v232 = vshll.u32 683565275, %v229
    %v233 = vshrl.u32 2475754826, %v230
    %v234 = vor.u32 %v232, %v233
    %v235 = vshll.u32 2475754826, %v229
    %v236 = vshrl.u32 2131351028, %v230
    %v237 = vor.u32 %v235, %v236
    %v238 = vshll.u32 2131351028, %v229
    %v239 = vshrl.u32 2102212464, %v230
    %v240 = vor.u32 %v238, %v239
    %v241 = vshll.u32 2102212464, %v229
    %v242 = vshrl.u32 920167782, %v230
    %v243 = vor.u32 %v241, %v242
    %v244 = vshll.u32 920167782, %v229
    %v245 = vshrl.u32 1326507024, %v230
    %v246 = vor.u32 %v244, %v245
    %vm247 = vcmp.lt.s32.totalorder %v228, 1
    %vm248 = vcmp.lt.s32.totalorder %v228, 2
    %vm249 = vcmp.lt.s32.totalorder %v228, 3
    %vm250 = vcmp.lt.s32.totalorder %v228, 4
    %v251 = vsel %vm247, %v231, %v234
    %v252 = vsel %vm250, %v240, 2102212464
    %v253 = vsel %vm249, %v237, %v252
    %v254 = vsel %vm248, %v251, %v253
    %v255 = vsel %vm247, %v234, %v237
    %v256 = vsel %vm250, %v243, 920167782
    %v257 = vsel %vm249, %v240, %v256
    %v258 = vsel %vm248, %v255, %v257
    %v259 = vsel %vm247, %v237, %v240
    %v260 = vsel %vm250, %v246, 1326507024
    %v261 = vsel %vm249, %v243, %v260
    %v262 = vsel %vm248, %v259, %v261
    %v263 = vshll.u32 %v223, 8
    %v264 = vand.u32 %v263, 65535
    %v265 = vshrl.u32 %v263, 16
    %v266 = vand.u32 %v262, 65535
    %v267 = vshrl.u32 %v262, 16
    %v268 = vmul.u32 %v264, %v266
    %v269 = vmul.u32 %v264, %v267
    %v270 = vmul.u32 %v265, %v266
    %v271 = vmul.u32 %v265, %v267
    %v272 = vshll.u32 %v269, 16
    %v273 = vshrl.u32 %v269, 16
    %v274 = vshll.u32 %v270, 16
    %v275 = vshrl.u32 %v270, 16
    %vm276 = vc.u32 %v268, %v272
    %v277 = vsel %vm276, 1, 0
    %v278 = vadd.s32 %v268, %v272
    %v279 = vadd.s32 %v271, %v277
    %vm280 = vc.u32 %v278, %v274
    %v281 = vsel %vm280, 1, 0
    %v282 = vadd.s32 %v278, %v274
    %v283 = vadd.s32 %v279, %v281
    %v284 = vadd.s32 %v283, %v273
    %v285 = vadd.s32 %v284, %v275
    %v286 = vand.u32 %v263, 65535
    %v287 = vshrl.u32 %v263, 16
    %v288 = vand.u32 %v258, 65535
    %v289 = vshrl.u32 %v258, 16
    %v290 = vmul.u32 %v286, %v288
    %v291 = vmul.u32 %v286, %v289
    %v292 = vmul.u32 %v287, %v288
    %v293 = vmul.u32 %v287, %v289
    %v294 = vshll.u32 %v291, 16
    %v295 = vshrl.u32 %v291, 16
    %v296 = vshll.u32 %v292, 16
    %v297 = vshrl.u32 %v292, 16
    %vm298 = vc.u32 %v290, %v294
    %v299 = vsel %vm298, 1, 0
    %v300 = vadd.s32 %v290, %v294
    %v301 = vadd.s32 %v293, %v299
    %vm302 = vc.u32 %v300, %v296
    %v303 = vsel %vm302, 1, 0
    %v304 = vadd.s32 %v300, %v296
    %v305 = vadd.s32 %v301, %v303
    %v306 = vadd.s32 %v305, %v295
    %v307 = vadd.s32 %v306, %v297
    %v308 = vmul.u32 %v263, %v254
    %v309 = vadd.s32 %v285, %v304
    %vm310 = vc.u32 %v285, %v304
    %v311 = vadd.s32 %v307, 1
    %v312 = vsel %vm310, %v311, %v307
    %v313 = vadd.s32 %v308, %v312
    %v314 = vadd.s32 %v313, 536870912
    %v315 = vshrl.u32 %v314, 30
    %v316 = vshll.u32 %v315, 30
    %v317 = vsub.s32 %v313, %v316
    %vm318 = vcmp.lt.s32.totalorder %v317, 0
    %v319 = vsub.s32 0, %v317
    %v320 = vsel %vm318, %v319, %v317
    %v321 = vclz %v320
    %v322 = vsub.s32 %v321, 2
    %vm323 = vcmp.gt.s32.totalorder 0, %v322
    %v324 = vsel %vm323, 0, %v322
    %v325 = vsub.s32 32, %v324
    %v326 = vshll.u32 %v317, %v324
    %v327 = vshrl.u32 %v309, %v325
    %v328 = vor.u32 %v326, %v327
    %v329 = vsub.s32 4294967266, %v324
    %v330 = vadd.s32 %v329, 127
    %v331 = vshll.u32 %v330, 23
    %v332 = vor.u32 4788187, %v331
    %v333 = vand.u32 2147483647, %v332
    %v335 = vcvt.s32.f32 %v328
    %v336 = vmul.f32 %v335, %v333
    %v337 = vxor.u32 %v336, 2147483648
    %v338 = vsel %vm217, %v337, %v336
    %v339 = vsub.s32 4, %v315
    %v340 = vsel %vm217, %v339, %v315
    %v341 = vsel %vm216, %v59, %v338
    %v342 = vsel %vm216, 0, %v340
    %v343 = vmul.f32 %v341, %v341
    %v344 = vmul.f32 %v343, -0.001358992
    %v345 = vadd.f32 %v344, 0.041655596
    %v346 = vmul.f32 %v343, %v345
    %v347 = vadd.f32 %v346, -0.4999988
    %v348 = vmul.f32 %v343, %v347
    %v349 = vadd.f32 1.0, %v348
    %v350 = vmul.f32 %v341, %v341
    %v351 = vmul.f32 %v350, -0.00019511016
    %v352 = vadd.f32 %v351, 0.008332121
    %v353 = vmul.f32 %v350, %v352
    %v354 = vadd.f32 %v353, -0.16666654
    %v355 = vmul.f32 %v350, %v354
    %v356 = vadd.f32 %v355, 1.0
    %v357 = vmul.f32 %v356, %v341
    %vm358 = vweird.f32 %v59
    %v359 = vand.u32 %v342, 3
    %vm360 = vcmp.lt.s32.totalorder %v359, 2
    %vm361 = vcmp.eq.s32.totalorder %v359, 0
    %v362 = vxor.u32 %v357, 2147483648
    %v363 = vsel %vm361, %v349, %v362
    %vm364 = vcmp.eq.s32.totalorder %v359, 2
    %v365 = vxor.u32 %v349, 2147483648
    %v366 = vsel %vm364, %v365, %v357
    %v367 = vsel %vm360, %v363, %v366
    %v368 = vsel %vm358, nan, %v367
    %v370 = vrot.slane %v214, 4
    %vm372 = vcmask 1043456
    %v373 = vsel %vm372, %v59, %v370
    %v374 = vpack.c.bf16 %v368, %v373
    %v375 = vld [vmem:[#allocation2] sm:$0xf]
    %v376 = vld [vmem:[#allocation2 + $0x4] sm:$0xf]
    %v377 = vld [vmem:[#allocation2 + $0x8] sm:$0xf]
    %v378 = vld [vmem:[#allocation2 + $0xc] sm:$0xf]
    %v379 = vld [vmem:[%s2] sm:$0xff]
    %v380 = vld [vmem:[%s2 + $0x8] sm:$0xff]
    %v381 = vld [vmem:[%s2 + $0x10] sm:$0xff]
    %v382 = vld [vmem:[%s2 + $0x18] sm:$0xff]
    %384 = vset.pattern.permute.xlu0 0
    %385 = vperm.xlu0 %384, %v379
    %v386 = vpop.permute.xlu0 %385
    %389 = vset.pattern.permute.xlu0 0
    %390 = vperm.xlu0 %389, %v380
    %v391 = vpop.permute.xlu0 %390
    %394 = vset.pattern.permute.xlu0 0
    %395 = vperm.xlu0 %394, %v381
    %v396 = vpop.permute.xlu0 %395
    %399 = vset.pattern.permute.xlu0 0
    %400 = vperm.xlu0 %399, %v382
    %v401 = vpop.permute.xlu0 %400
    %v407 = vunpack.c.l.b16 %v375
    %v408 = vunpack.c.l.b16 %v376
    %v409 = vunpack.c.l.b16 %v377
    %v410 = vunpack.c.l.b16 %v378
    %v411 = vpack.c.b16 %v408, %v407
    %v412 = vpack.c.b16 %v410, %v409
    %vm413 = vcmask 97280
    %v415 = vsel %vm413, %v411, 0
    %v418 = vsel %vm413, %v412, 0
    %vm420 = vcmask 1045504
    %v422 = vsel %vm420, %v374, 0
    %424 = vmatpush.bf16.msra.mxu0 0
    %425 = vmatpush.bf16.msra.mxu0 0
    %426 = vmatpush.bf16.msra.mxu0 0
    %427 = vmatpush.bf16.msra.mxu0 0
    %428 = vmatpush.bf16.msra.mxu0 0
    %429 = vmatpush.bf16.msra.mxu0 0
    %430 = vmatpush.bf16.msra.mxu0 0
    %431 = vmatpush.bf16.msra.mxu0 %v422
    %432 = vmatmul.bf16.gmra.mxu0 %v415
    %v433 = vpop.f32.mrf.mxu0
    %v434 = vadd.f32 %v386, %v433
    %v435 = vpop.f32.mrf.mxu0
    %v436 = vadd.f32 %v391, %v435
    %437 = vmatmul.bf16.gmra.mxu0 %v418
    %v438 = vpop.f32.mrf.mxu0
    %v439 = vadd.f32 %v396, %v438
    %v440 = vpop.f32.mrf.mxu0
    %v441 = vadd.f32 %v401, %v440
    %442 = vdwg.mxu0
    %v443 = vmax.f32 %v434, 0.0
    %v444 = vmax.f32 %v436, 0.0
    %v445 = vmax.f32 %v439, 0.0
    %v446 = vmax.f32 %v441, 0.0
    %v447 = vpack.c.bf16 %v444, %v443
    %v448 = vpack.c.bf16 %v446, %v445
    %v449 = vld [vmem:[#allocation4] sm:$0xf]
    %v450 = vld [vmem:[#allocation4 + $0x4] sm:$0xf]
    %v451 = vld [vmem:[#allocation4 + $0x8] sm:$0xf]
    %v452 = vld [vmem:[#allocation4 + $0xc] sm:$0xf]
    %v453 = vld [vmem:[%s4] sm:$0xff]
    %v454 = vld [vmem:[%s4 + $0x8] sm:$0xff]
    %v455 = vld [vmem:[%s4 + $0x10] sm:$0xff]
    %v456 = vld [vmem:[%s4 + $0x18] sm:$0xff]
    %458 = vset.pattern.permute.xlu0 0
    %459 = vperm.xlu0 %458, %v453
    %v460 = vpop.permute.xlu0 %459
    %463 = vset.pattern.permute.xlu0 0
    %464 = vperm.xlu0 %463, %v454
    %v465 = vpop.permute.xlu0 %464
    %468 = vset.pattern.permute.xlu0 0
    %469 = vperm.xlu0 %468, %v455
    %v470 = vpop.permute.xlu0 %469
    %473 = vset.pattern.permute.xlu0 0
    %474 = vperm.xlu0 %473, %v456
    %v475 = vpop.permute.xlu0 %474
    %v481 = vunpack.c.l.b16 %v449
    %v482 = vunpack.c.l.b16 %v450
    %v483 = vunpack.c.l.b16 %v451
    %v484 = vunpack.c.l.b16 %v452
    %v485 = vpack.c.b16 %v482, %v481
    %v486 = vpack.c.b16 %v484, %v483
    %vm487 = vcmask 261120
    %v489 = vsel %vm487, %v485, 0
    %v492 = vsel %vm487, %v486, 0
    %494 = vmatpush.bf16.msra.mxu0 0
    %495 = vmatpush.bf16.msra.mxu0 0
    %496 = vmatpush.bf16.msra.mxu0 0
    %497 = vmatpush.bf16.msra.mxu0 0
    %498 = vmatpush.bf16.msra.mxu0 0
    %499 = vmatpush.bf16.msra.mxu0 0
    %500 = vmatpush.bf16.msra.mxu0 %v448
    %501 = vmatpush.bf16.msra.mxu0 %v447
    %502 = vmatmul.bf16.gmra.mxu0 %v489
    %v503 = vpop.f32.mrf.mxu0
    %v504 = vadd.f32 %v460, %v503
    %v505 = vpop.f32.mrf.mxu0
    %v506 = vadd.f32 %v465, %v505
    %507 = vmatmul.bf16.gmra.mxu0 %v492
    %v508 = vpop.f32.mrf.mxu0
    %v509 = vadd.f32 %v470, %v508
    %v510 = vpop.f32.mrf.mxu0
    %v511 = vadd.f32 %v475, %v510
    %512 = vdwg.mxu0
    %v513 = vmax.f32 %v504, 0.0
    %v514 = vmax.f32 %v506, 0.0
    %v515 = vmax.f32 %v509, 0.0
    %v516 = vmax.f32 %v511, 0.0
    %v517 = vpack.c.bf16 %v514, %v513
    %v518 = vpack.c.bf16 %v516, %v515
    %v519 = vld [vmem:[%s5] sm:$0x1]
    %v520 = vld [vmem:[%s6] sm:$0x3]
    %522 = vset.pattern.permute.xlu0 0
    %523 = vperm.xlu0 %522, %v520
    %v524 = vpop.permute.xlu0 %523
    %v527 = vsel %vm487, %v519, 0
    %529 = vmatpush.bf16.msra.mxu0 0
    %530 = vmatpush.bf16.msra.mxu0 0
    %531 = vmatpush.bf16.msra.mxu0 0
    %532 = vmatpush.bf16.msra.mxu0 0
    %533 = vmatpush.bf16.msra.mxu0 0
    %534 = vmatpush.bf16.msra.mxu0 0
    %535 = vmatpush.bf16.msra.mxu0 %v518
    %536 = vmatpush.bf16.msra.mxu0 %v517
    %537 = vmatmul.bf16.gmra.mxu0 %v527
    %v538 = vpop.f32.mrf.mxu0
    %v539 = vadd.f32 %v524, %v538
    %v540 = vpop.f32.mrf.mxu0
    %541 = vdwg.mxu0
    %vm542 = vcmask 9216
    %543 = vst.msk [vmem:[%s7] sm:$0x3] %vm542, %v539
    // Predicated region
    $region38: #{_forward_impl.1} parent=1 // pred_check
      _
    $region39: #{_forward_impl.1} parent=1 // pred_check_branch
      %545 = sbr.rel (0) target = $region41
    $region40: #{_forward_impl.1} parent=1 // pred_region
      _
    $region41: #{_forward_impl.1} parent=1 // pred_fallthru
      _
    // Predicated region
    $region42: #{_forward_impl.1} parent=1 // pred_check
      _
    $region43: #{_forward_impl.1} parent=1 // pred_check_branch
      %547 = sbr.rel (0) target = $region45
    $region44: #{_forward_impl.1} parent=1 // pred_region
      _
    $region45: #{_forward_impl.1} parent=1 // pred_fallthru
      _
    %548 = vsyncpa [#allocation3], 1
    %549 = vsyncpa [#allocation5], 1

</llo_original>
